<compile_context>
chip_gen: v7x
topology: tpu7x:2x2x1
jax: 0.10.0
libtpu: 0.0.40
codegen_flags: <defaults>
</compile_context>

<pallas_src>
import functools
import math

import jax
import jax.numpy as jnp
from jax import lax
from jax.experimental import pallas as pl
from jax.experimental.pallas import tpu as pltpu


_INV_SQRT2 = 1.0 / math.sqrt(2.0)
_COMPUTE_DTYPE = jnp.bfloat16          # MXU operand dtype


def _gelu_exact(v):
    # Exact (erf-based) GELU, matching torch.nn.GELU() / F.gelu default.
    return 0.5 * v * (1.0 + lax.erf(v * _INV_SQRT2))


# ----------------------------- kernels ---------------------------------------


def _linear_kernel(x_ref, w_ref, b_ref, o_ref, acc_ref, *, apply_gelu):
    # x_ref: (tm, tk) bf16; w_ref: (tk, tn) bf16 (already transposed); b_ref: (1, tn) f32.
    kk = pl.program_id(2)

    @pl.when(kk == 0)
    def _():
        acc_ref[...] = jnp.zeros_like(acc_ref)

    acc_ref[...] += jnp.dot(x_ref[...], w_ref[...],
                            preferred_element_type=jnp.float32)

    @pl.when(kk == pl.num_programs(2) - 1)
    def _():
        h = acc_ref[...] + b_ref[...].astype(jnp.float32)
        if apply_gelu:
            h = _gelu_exact(h)
        o_ref[...] = h.astype(o_ref.dtype)


def _geglu_kernel(x_ref, w_ref, b_ref, o_ref, acc_ref, *, tn):
    # x_ref: (tm, tk) bf16; w_ref: (tk, 2*tn) bf16 ([value|gate] columns of this output
    # tile, lane-contiguous); b_ref: (1, 2*tn) f32; acc_ref: (tm, 2*tn) f32.
    kk = pl.program_id(2)

    @pl.when(kk == 0)
    def _():
        acc_ref[...] = jnp.zeros_like(acc_ref)

    acc_ref[...] += jnp.dot(x_ref[...], w_ref[...],
                            preferred_element_type=jnp.float32)

    @pl.when(kk == pl.num_programs(2) - 1)
    def _():
        h = acc_ref[...] + b_ref[...].astype(jnp.float32)
        val, gate = h[:, :tn], h[:, tn:]
        o_ref[...] = (val * _gelu_exact(gate)).astype(o_ref.dtype)


# ----------------------------- planning helpers -------------------------------


def _round_up(v, m):
    return (v + m - 1) // m * m


def _vmem_budget():
    phys = 64 * 1024 * 1024                     # conservative fallback (v7x per-TC VMEM)
    try:
        phys = int(pltpu.get_tpu_info().vmem_capacity_bytes)
    except Exception:
        pass
    scoped_default = 16 * 1024 * 1024           # v5e's scoped default (safe lower bound)
    cap = (phys * 3) // 4                       # 48 MiB on v7x, 96 MiB on v5e/v6e
    return scoped_default, cap


def _pick_tm(m):
    # Balanced row tile <= 256, sublane-aligned for bf16: caps padding waste at one sublane.
    chunks = -(-m // 256)
    tm = -(-m // chunks)
    return _round_up(tm, 16)


def _pick_tn(n_pad):
    if n_pad % 256 == 0:
        return 256
    if n_pad % 128 == 0:
        return 128
    return n_pad                                # small / odd N: full width (block == array dim)


def _tk_candidates(k):
    # Full K first, then descending divisors of K that are multiples of 128.
    cands = [k]
    if k % 128 == 0:
        for d in range(k - 128, 127, -128):
            if k % d == 0:
                cands.append(d)
    return cands


def _step_bytes(tm, tn_out, tn_lane, tk, out_itemsize):
    x_b = 2 * tm * tk * 2                       # double-buffered bf16 activation tile
    w_b = 2 * tk * tn_lane * 2                  # double-buffered bf16 weight tile
    b_b = 2 * tn_lane * 4                       # bias
    o_b = 2 * tm * tn_out * out_itemsize        # double-buffered output tile
    acc_b = tm * tn_lane * 4                    # f32 accumulator scratch
    return x_b + w_b + b_b + o_b + acc_b


def _plan_tiles(m, k, n_pad, lane_mult, out_itemsize):
    """Returns (tm, tn, tk, vmem_limit_bytes or None)."""
    scoped_default, cap = _vmem_budget()
    slack = 2 * 1024 * 1024                     # headroom for compiler-internal scratch
    tm0, tn0 = _pick_tm(m), _pick_tn(n_pad)
    tm_opts = list(dict.fromkeys(t for t in (tm0, 128, 64) if t <= tm0))
    tn_opts = [tn0] + ([128] if (tn0 > 128 and n_pad % 128 == 0) else [])
    tk_opts = _tk_candidates(k)
    for tm in tm_opts:                          # prefer K-tiling before shrinking tn / tm
        for tn in tn_opts:
            for tk in tk_opts:
                need = _step_bytes(tm, tn, lane_mult * tn, tk, out_itemsize) + slack
                if need <= cap:
                    limit = None if need <= scoped_default else int(need)
                    return tm, tn, tk, limit
    return tm_opts[-1], tn_opts[-1], tk_opts[-1], int(cap)


def _maps(n_outer, w_is_3d):
    # Grid is (outer, inner, k); k is always innermost (reduction).
    if n_outer:                                 # weight-resident: N outer, M inner
        xmap = lambda j, i, kk: (i, kk)
        omap = lambda j, i, kk: (i, j)
        if w_is_3d:
            wmap = lambda j, i, kk: (j, kk, 0)
            bmap = lambda j, i, kk: (j, 0, 0)
        else:
            wmap = lambda j, i, kk: (kk, j)
            bmap = lambda j, i, kk: (0, j)
    else:                                       # activation-resident: M outer, N inner
        xmap = lambda i, j, kk: (i, kk)
        omap = lambda i, j, kk: (i, j)
        if w_is_3d:
            wmap = lambda i, j, kk: (j, kk, 0)
            bmap = lambda i, j, kk: (j, 0, 0)
        else:
            wmap = lambda i, j, kk: (kk, j)
            bmap = lambda i, j, kk: (0, j)
    return xmap, wmap, bmap, omap


def _flatten_rows(x):
    lead = x.shape[:-1]
    m = 1
    for d in lead:
        m *= d
    return x.reshape(m, x.shape[-1]), lead, m


def _compiler_params(vmem_limit):
    return pltpu.CompilerParams(
        dimension_semantics=("parallel", "parallel", "arbitrary"),
        vmem_limit_bytes=vmem_limit)


# ----------------------------- wrappers ---------------------------------------


def linear(x, weight, bias, *, apply_gelu=False, out_dtype=None):
    """y = x @ weight.T + bias (optionally exact GELU). weight: (N, K) torch layout."""
    n, k = weight.shape
    out_dtype = x.dtype if out_dtype is None else out_dtype
    x2d, lead, m = _flatten_rows(x)

    n_pad = n if n <= 128 else _round_up(n, 128)
    tm, tn, tk, vmem_limit = _plan_tiles(m, k, n_pad, 1, jnp.dtype(out_dtype).itemsize)
    m_pad = _round_up(m, tm)

    x2d = x2d.astype(_COMPUTE_DTYPE)
    if m_pad != m:
        x2d = jnp.pad(x2d, ((0, m_pad - m), (0, 0)))

    w, b = weight, bias
    if n_pad != n:
        w = jnp.pad(w, ((0, n_pad - n), (0, 0)))
        b = jnp.pad(b, ((0, n_pad - n),))
    w_t = w.T.astype(_COMPUTE_DTYPE)            # (K, n_pad): one fused cast+transpose copy
    b2d = b.reshape(1, n_pad).astype(jnp.float32)

    m_t, n_t, k_t = m_pad // tm, n_pad // tn, k // tk
    n_outer = n_pad >= m_pad                    # resident operand = the larger one
    grid = (n_t, m_t, k_t) if n_outer else (m_t, n_t, k_t)
    xmap, wmap, bmap, omap = _maps(n_outer, w_is_3d=False)

    out2d = pl.pallas_call(
        functools.partial(_linear_kernel, apply_gelu=apply_gelu),
        out_shape=jax.ShapeDtypeStruct((m_pad, n_pad), out_dtype),
        grid=grid,
        in_specs=[
            pl.BlockSpec((tm, tk), xmap),       # activation rows
            pl.BlockSpec((tk, tn), wmap),       # pre-transposed weight tile
            pl.BlockSpec((1, tn), bmap),        # bias tile
        ],
        out_specs=pl.BlockSpec((tm, tn), omap),
        scratch_shapes=[pltpu.VMEM((tm, tn), jnp.float32)],
        compiler_params=_compiler_params(vmem_limit),
    )(x2d, w_t, b2d)

    if m_pad != m or n_pad != n:
        out2d = out2d[:m, :n]
    return out2d.reshape(*lead, n)


def geglu(x, weight, bias, *, out_dtype=None):
    """GEGLU: v, g = (x @ weight.T + bias).chunk(2, -1); return v * gelu(g).

    weight: (2*dim_out, dim_in) torch layout; bias: (2*dim_out,).
    """
    two_n, k = weight.shape
    n = two_n // 2
    out_dtype = x.dtype if out_dtype is None else out_dtype
    x2d, lead, m = _flatten_rows(x)

    n_pad = n if n <= 128 else _round_up(n, 128)
    tm, tn, tk, vmem_limit = _plan_tiles(m, k, n_pad, 2, jnp.dtype(out_dtype).itemsize)
    m_pad = _round_up(m, tm)
    n_t = n_pad // tn

    x2d = x2d.astype(_COMPUTE_DTYPE)
    if m_pad != m:
        x2d = jnp.pad(x2d, ((0, m_pad - m), (0, 0)))

    # One fused cast+relayout copy: each output tile's value+gate columns become a
    # contiguous lane-dense (K, 2*tn) slab -> single MXU matmul per grid step.
    w2 = weight.reshape(2, n, k)
    b2 = bias.reshape(2, n)
    if n_pad != n:
        w2 = jnp.pad(w2, ((0, 0), (0, n_pad - n), (0, 0)))
        b2 = jnp.pad(b2, ((0, 0), (0, n_pad - n)))
    w_arr = (w2.reshape(2, n_t, tn, k)
               .transpose(1, 3, 0, 2)           # (n_t, K, 2, tn)
               .reshape(n_t, k, 2 * tn)
               .astype(_COMPUTE_DTYPE))
    b_arr = (b2.reshape(2, n_t, tn)
               .transpose(1, 0, 2)              # (n_t, 2, tn)
               .reshape(n_t, 1, 2 * tn)
               .astype(jnp.float32))

    m_t, k_t = m_pad // tm, k // tk
    n_outer = 2 * n_pad >= m_pad
    grid = (n_t, m_t, k_t) if n_outer else (m_t, n_t, k_t)
    xmap, wmap, bmap, omap = _maps(n_outer, w_is_3d=True)

    out2d = pl.pallas_call(
        functools.partial(_geglu_kernel, tn=tn),
        out_shape=jax.ShapeDtypeStruct((m_pad, n_pad), out_dtype),
        grid=grid,
        in_specs=[
            pl.BlockSpec((tm, tk), xmap),                 # activation rows
            pl.BlockSpec((None, tk, 2 * tn), wmap),       # [value|gate] weight slab
            pl.BlockSpec((None, 1, 2 * tn), bmap),        # [value|gate] bias
        ],
        out_specs=pl.BlockSpec((tm, tn), omap),
        scratch_shapes=[pltpu.VMEM((tm, 2 * tn), jnp.float32)],
        compiler_params=_compiler_params(vmem_limit),
    )(x2d, w_arr, b_arr)

    if m_pad != m or n_pad != n:
        out2d = out2d[:m, :n]
    return out2d.reshape(*lead, n)


def feed_forward(x, w1, b1, w2, b2, *, glu=False):
    """FeedForward.forward: project_in (Linear+GELU or GEGLU) -> Dropout(0) -> Linear."""
    # Intermediate activation emitted in bf16: half the HBM round trip and already the
    # MXU operand dtype of the second linear.
    if glu:
        h = geglu(x, w1, b1, out_dtype=_COMPUTE_DTYPE)
    else:
        h = linear(x, w1, b1, apply_gelu=True, out_dtype=_COMPUTE_DTYPE)
    # nn.Dropout(p=0.0) is identity at inference; nothing to do.
    return linear(h, w2, b2, apply_gelu=False, out_dtype=x.dtype)


# ----------------------------- reference & demo -------------------------------


def feed_forward_ref(x, w1, b1, w2, b2, *, glu=False):
    h = jnp.einsum("...k,nk->...n", x, w1) + b1
    if glu:
        d = w1.shape[0] // 2
        h = h[..., :d] * jax.nn.gelu(h[..., d:], approximate=False)
    else:
        h = jax.nn.gelu(h, approximate=False)
    return jnp.einsum("...k,nk->...n", h, w2) + b2


if __name__ == "__main__":
    batch, seq, dim, mult = 2, 8, 32, 4
    inner_dim = dim * mult            # 128
    dim_out = dim                     # default(dim_out, dim)

    key = jax.random.PRNGKey(0)
    kx, k1w, k1b, k2w, k2b, k3w, k3b = jax.random.split(key, 7)

    x = jax.random.normal(kx, (batch, seq, dim), dtype=jnp.float32)

    def init_linear(kw, kb, fan_out, fan_in):
        bound = 1.0 / math.sqrt(fan_in)
        w = jax.random.uniform(kw, (fan_out, fan_in), jnp.float32, -bound, bound)
        b = jax.random.uniform(kb, (fan_out,), jnp.float32, -bound, bound)
        return w, b

    ff = jax.jit(feed_forward, static_argnames=("glu",))

    # glu=False (module default): Linear(dim, inner) + GELU, then Linear(inner, dim_out)
    w1, b1 = init_linear(k1w, k1b, inner_dim, dim)
    w2, b2 = init_linear(k2w, k2b, dim_out, inner_dim)
    out = jax.block_until_ready(ff(x, w1, b1, w2, b2, glu=False))
    ref = feed_forward_ref(x, w1, b1, w2, b2, glu=False)
    assert out.shape == (batch, seq, dim_out)
    assert jnp.allclose(out, ref, atol=2e-2, rtol=2e-2), "glu=False mismatch vs reference"

    # glu=True path: GEGLU(dim, inner) then Linear(inner, dim_out)
    w1g, b1g = init_linear(k3w, k3b, 2 * inner_dim, dim)
    out_g = jax.block_until_ready(ff(x, w1g, b1g, w2, b2, glu=True))
    ref_g = feed_forward_ref(x, w1g, b1g, w2, b2, glu=True)
    assert out_g.shape == (batch, seq, dim_out)
    assert jnp.allclose(out_g, ref_g, atol=2e-2, rtol=2e-2), "glu=True mismatch vs reference"

    print("KERNEL_OK")
</pallas_src>

<mosaic_0001>
module attributes {stable_mosaic.version = 11 : i64} {
  func.func @_linear_kernel(%arg0: i32, %arg1: i32, %arg2: i32, %arg3: memref<16x32xbf16, #tpu.memory_space<vmem>>, %arg4: memref<32x128xbf16, #tpu.memory_space<vmem>>, %arg5: memref<1x128xf32, #tpu.memory_space<vmem>>, %arg6: memref<16x128xbf16, #tpu.memory_space<vmem>>, %arg7: memref<16x128xf32, #tpu.memory_space<vmem>>) attributes {dimension_semantics = [#tpu.dimension_semantics<parallel>, #tpu.dimension_semantics<parallel>, #tpu.dimension_semantics<arbitrary>], iteration_bounds = array<i64: 1, 1, 1>, scalar_prefetch = 0 : i64, scratch_operands = 1 : i64, tpu.core_type = #tpu.core_type<tc>, window_params = [{transform_indices = @transform_0, window_bounds = array<i64: 16, 32>}, {transform_indices = @transform_1, window_bounds = array<i64: 32, 128>}, {transform_indices = @transform_2, window_bounds = array<i64: 1, 128>}, {transform_indices = @transform_3, window_bounds = array<i64: 16, 128>}]} {
    %c0_i32 = arith.constant 0 : i32
    %0 = arith.cmpi eq, %arg2, %c0_i32 : i32
    %1 = arith.extui %0 : i1 to i32
    %c0_i32_0 = arith.constant 0 : i32
    %2 = arith.cmpi ne, %1, %c0_i32_0 : i32
    scf.if %2 {
      %cst_10 = arith.constant 0.000000e+00 : f32
      %12 = vector.broadcast %cst_10 : f32 to vector<16x128xf32>
      %c0_11 = arith.constant 0 : index
      %c0_12 = arith.constant 0 : index
      %13 = vector.load %arg7[%c0_11, %c0_12] : memref<16x128xf32, #tpu.memory_space<vmem>>, vector<16x128xf32>
      tpu.vector_store %arg7[%c0_11, %c0_12], %12 {strides = array<i32>} : memref<16x128xf32, #tpu.memory_space<vmem>>, vector<16x128xf32>,
    } else {
    }
    %c0 = arith.constant 0 : index
    %c0_1 = arith.constant 0 : index
    %3 = vector.load %arg7[%c0, %c0_1] : memref<16x128xf32, #tpu.memory_space<vmem>>, vector<16x128xf32>
    %c0_2 = arith.constant 0 : index
    %c0_3 = arith.constant 0 : index
    %4 = vector.load %arg3[%c0_2, %c0_3] : memref<16x32xbf16, #tpu.memory_space<vmem>>, vector<16x32xbf16>
    %c0_4 = arith.constant 0 : index
    %c0_5 = arith.constant 0 : index
    %5 = vector.load %arg4[%c0_4, %c0_5] : memref<32x128xbf16, #tpu.memory_space<vmem>>, vector<32x128xbf16>
    %cst = arith.constant dense<0.000000e+00> : vector<16x128xf32>
    %6 = tpu.matmul %4, %5, %cst {dimension_numbers = #tpu.dot_dimension_numbers<[1], [0], [0], [1], [0, 0, 1, 1], [], []>} : vector<16x32xbf16>, vector<32x128xbf16>, vector<16x128xf32> -> vector<16x128xf32>
    %7 = arith.addf %3, %6 : vector<16x128xf32>
    %c0_6 = arith.constant 0 : index
    %c0_7 = arith.constant 0 : index
    %8 = vector.load %arg7[%c0_6, %c0_7] : memref<16x128xf32, #tpu.memory_space<vmem>>, vector<16x128xf32>
    tpu.vector_store %arg7[%c0_6, %c0_7], %7 {strides = array<i32>} : memref<16x128xf32, #tpu.memory_space<vmem>>, vector<16x128xf32>,
    %c0_i32_8 = arith.constant 0 : i32
    %9 = arith.cmpi eq, %arg2, %c0_i32_8 : i32
    %10 = arith.extui %9 : i1 to i32
    %c0_i32_9 = arith.constant 0 : i32
    %11 = arith.cmpi ne, %10, %c0_i32_9 : i32
    scf.if %11 {
      %c0_10 = arith.constant 0 : index
      %c0_11 = arith.constant 0 : index
      %12 = vector.load %arg7[%c0_10, %c0_11] : memref<16x128xf32, #tpu.memory_space<vmem>>, vector<16x128xf32>
      %c0_12 = arith.constant 0 : index
      %c0_13 = arith.constant 0 : index
      %13 = vector.load %arg5[%c0_12, %c0_13] : memref<1x128xf32, #tpu.memory_space<vmem>>, vector<1x128xf32>
      %14 = vector.broadcast %13 : vector<1x128xf32> to vector<16x128xf32>
      %15 = arith.addf %12, %14 : vector<16x128xf32>
      %cst_14 = arith.constant 5.000000e-01 : f32
      %16 = vector.broadcast %cst_14 : f32 to vector<16x128xf32>
      %17 = arith.mulf %16, %15 : vector<16x128xf32>
      %cst_15 = arith.constant 0.707106769 : f32
      %18 = vector.broadcast %cst_15 : f32 to vector<16x128xf32>
      %19 = arith.mulf %15, %18 : vector<16x128xf32>
      %20 = math.erf %19 : vector<16x128xf32>
      %cst_16 = arith.constant 1.000000e+00 : f32
      %21 = vector.broadcast %cst_16 : f32 to vector<16x128xf32>
      %22 = arith.addf %21, %20 : vector<16x128xf32>
      %23 = arith.mulf %17, %22 : vector<16x128xf32>
      %24 = arith.truncf %23 : vector<16x128xf32> to vector<16x128xbf16>
      %c0_17 = arith.constant 0 : index
      %c0_18 = arith.constant 0 : index
      %25 = vector.load %arg6[%c0_17, %c0_18] : memref<16x128xbf16, #tpu.memory_space<vmem>>, vector<16x128xbf16>
      tpu.vector_store %arg6[%c0_17, %c0_18], %24 {strides = array<i32>} : memref<16x128xbf16, #tpu.memory_space<vmem>>, vector<16x128xbf16>,
    } else {
    }
    return
  }
  func.func @transform_0(%arg0: i32, %arg1: i32, %arg2: i32) -> (i32, i32) {
    %c0_i32 = arith.constant 0 : i32
    return %arg1, %arg2 : i32, i32
  }
  func.func @transform_1(%arg0: i32, %arg1: i32, %arg2: i32) -> (i32, i32) {
    %c0_i32 = arith.constant 0 : i32
    return %arg2, %arg0 : i32, i32
  }
  func.func @transform_2(%arg0: i32, %arg1: i32, %arg2: i32) -> (i32, i32) {
    %c0_i32 = arith.constant 0 : i32
    %c0_i32_0 = arith.constant 0 : i32
    return %c0_i32, %arg0 : i32, i32
  }
  func.func @transform_3(%arg0: i32, %arg1: i32, %arg2: i32) -> (i32, i32) {
    %c0_i32 = arith.constant 0 : i32
    return %arg1, %arg0 : i32, i32
  }
}

module attributes {stable_mosaic.version = 11 : i64} {
  func.func @_linear_kernel(%arg0: i32, %arg1: i32, %arg2: i32, %arg3: memref<16x128xbf16, #tpu.memory_space<vmem>>, %arg4: memref<128x32xbf16, #tpu.memory_space<vmem>>, %arg5: memref<1x32xf32, #tpu.memory_space<vmem>>, %arg6: memref<16x32xf32, #tpu.memory_space<vmem>>, %arg7: memref<16x32xf32, #tpu.memory_space<vmem>>) attributes {dimension_semantics = [#tpu.dimension_semantics<parallel>, #tpu.dimension_semantics<parallel>, #tpu.dimension_semantics<arbitrary>], iteration_bounds = array<i64: 1, 1, 1>, scalar_prefetch = 0 : i64, scratch_operands = 1 : i64, tpu.core_type = #tpu.core_type<tc>, window_params = [{transform_indices = @transform_0, window_bounds = array<i64: 16, 128>}, {transform_indices = @transform_1, window_bounds = array<i64: 128, 32>}, {transform_indices = @transform_2, window_bounds = array<i64: 1, 32>}, {transform_indices = @transform_3, window_bounds = array<i64: 16, 32>}]} {
    %c0_i32 = arith.constant 0 : i32
    %0 = arith.cmpi eq, %arg2, %c0_i32 : i32
    %1 = arith.extui %0 : i1 to i32
    %c0_i32_0 = arith.constant 0 : i32
    %2 = arith.cmpi ne, %1, %c0_i32_0 : i32
    scf.if %2 {
      %cst_10 = arith.constant 0.000000e+00 : f32
      %12 = vector.broadcast %cst_10 : f32 to vector<16x32xf32>
      %c0_11 = arith.constant 0 : index
      %c0_12 = arith.constant 0 : index
      %13 = vector.load %arg7[%c0_11, %c0_12] : memref<16x32xf32, #tpu.memory_space<vmem>>, vector<16x32xf32>
      tpu.vector_store %arg7[%c0_11, %c0_12], %12 {strides = array<i32>} : memref<16x32xf32, #tpu.memory_space<vmem>>, vector<16x32xf32>,
    } else {
    }
    %c0 = arith.constant 0 : index
    %c0_1 = arith.constant 0 : index
    %3 = vector.load %arg7[%c0, %c0_1] : memref<16x32xf32, #tpu.memory_space<vmem>>, vector<16x32xf32>
    %c0_2 = arith.constant 0 : index
    %c0_3 = arith.constant 0 : index
    %4 = vector.load %arg3[%c0_2, %c0_3] : memref<16x128xbf16, #tpu.memory_space<vmem>>, vector<16x128xbf16>
    %c0_4 = arith.constant 0 : index
    %c0_5 = arith.constant 0 : index
    %5 = vector.load %arg4[%c0_4, %c0_5] : memref<128x32xbf16, #tpu.memory_space<vmem>>, vector<128x32xbf16>
    %cst = arith.constant dense<0.000000e+00> : vector<16x32xf32>
    %6 = tpu.matmul %4, %5, %cst {dimension_numbers = #tpu.dot_dimension_numbers<[1], [0], [0], [1], [0, 0, 1, 1], [], []>} : vector<16x128xbf16>, vector<128x32xbf16>, vector<16x32xf32> -> vector<16x32xf32>
    %7 = arith.addf %3, %6 : vector<16x32xf32>
    %c0_6 = arith.constant 0 : index
    %c0_7 = arith.constant 0 : index
    %8 = vector.load %arg7[%c0_6, %c0_7] : memref<16x32xf32, #tpu.memory_space<vmem>>, vector<16x32xf32>
    tpu.vector_store %arg7[%c0_6, %c0_7], %7 {strides = array<i32>} : memref<16x32xf32, #tpu.memory_space<vmem>>, vector<16x32xf32>,
    %c0_i32_8 = arith.constant 0 : i32
    %9 = arith.cmpi eq, %arg2, %c0_i32_8 : i32
    %10 = arith.extui %9 : i1 to i32
    %c0_i32_9 = arith.constant 0 : i32
    %11 = arith.cmpi ne, %10, %c0_i32_9 : i32
    scf.if %11 {
      %c0_10 = arith.constant 0 : index
      %c0_11 = arith.constant 0 : index
      %12 = vector.load %arg7[%c0_10, %c0_11] : memref<16x32xf32, #tpu.memory_space<vmem>>, vector<16x32xf32>
      %c0_12 = arith.constant 0 : index
      %c0_13 = arith.constant 0 : index
      %13 = vector.load %arg5[%c0_12, %c0_13] : memref<1x32xf32, #tpu.memory_space<vmem>>, vector<1x32xf32>
      %14 = vector.broadcast %13 : vector<1x32xf32> to vector<16x32xf32>
      %15 = arith.addf %12, %14 : vector<16x32xf32>
      %c0_14 = arith.constant 0 : index
      %c0_15 = arith.constant 0 : index
      %16 = vector.load %arg6[%c0_14, %c0_15] : memref<16x32xf32, #tpu.memory_space<vmem>>, vector<16x32xf32>
      tpu.vector_store %arg6[%c0_14, %c0_15], %15 {strides = array<i32>} : memref<16x32xf32, #tpu.memory_space<vmem>>, vector<16x32xf32>,
    } else {
    }
    return
  }
  func.func @transform_0(%arg0: i32, %arg1: i32, %arg2: i32) -> (i32, i32) {
    %c0_i32 = arith.constant 0 : i32
    return %arg1, %arg2 : i32, i32
  }
  func.func @transform_1(%arg0: i32, %arg1: i32, %arg2: i32) -> (i32, i32) {
    %c0_i32 = arith.constant 0 : i32
    return %arg2, %arg0 : i32, i32
  }
  func.func @transform_2(%arg0: i32, %arg1: i32, %arg2: i32) -> (i32, i32) {
    %c0_i32 = arith.constant 0 : i32
    %c0_i32_0 = arith.constant 0 : i32
    return %c0_i32, %arg0 : i32, i32
  }
  func.func @transform_3(%arg0: i32, %arg1: i32, %arg2: i32) -> (i32, i32) {
    %c0_i32 = arith.constant 0 : i32
    return %arg1, %arg0 : i32, i32
  }
}

</mosaic_0001>

<llo_original>
// kernel: feed_forward.3
$region0: #{feed_forward.3}
  #allocation0 [shape = 'u32[]', space=smem, size = 0x4, offset = 0x4, fixed_abs, tag = 'smem constant byte address 0x4 - core index']
  #allocation1 [shape = 'u32[144,128]{1,0:T(1,128)}', space=vmem, size = 0x12000, scoped, tag = 'internal scratch']
  #allocation2 [shape = 'f32[16,32]{1,0:T(8,128)}', space=vmem, size = 0x2000, scoped, tag = 'scratch operand']
  %s0 = inlined_call_operand.vmem [shape: bf16[16,128], index: 0, kind: input, shape index: {}]
  %s1 = inlined_call_operand.vmem [shape: bf16[128,32], index: 1, kind: input, shape index: {}]
  %s2 = inlined_call_operand.vmem [shape: f32[1,32], index: 2, kind: input, shape index: {}]
  %s3 = inlined_call_operand.hbm [shape: f32[16,32], index: 3, kind: output, shape index: {}]
  %s4 = sld [smem:[#allocation0]]
  $region30: #{feed_forward.3} parent=0
    _
  %s6 = ssub.s32 1, %s4
  %s7 = scalar_select 0, %s6, %s4
  $region1: #{feed_forward.3} parent=0
    #allocation3 [shape = 'u8[8192]{0}', space=vmem, size = 0x2000, scoped, tag = 'output window, operand 0, single buffered']
    #allocation4 [shape = 's32[1]{0}', space=sflag, size = 0x4, scoped, tag = 'scoped memory for feed_forward.3']
    %8 = vsyncpa [#allocation4], 0
    // Predicated region
    $region2: #{feed_forward.3} parent=1 // pred_check
      _
    $region3: #{feed_forward.3} parent=1 // pred_check_branch
      %10 = sbr.rel (0) target = $region5
    $region4: #{feed_forward.3} parent=1 // pred_region
      _
    $region5: #{feed_forward.3} parent=1 // pred_fallthru
      _
    // Predicated region
    $region6: #{feed_forward.3} parent=1 // pred_check
      _
    $region7: #{feed_forward.3} parent=1 // pred_check_branch
      %12 = sbr.rel (0) target = $region9
    $region8: #{feed_forward.3} parent=1 // pred_region
      _
    $region9: #{feed_forward.3} parent=1 // pred_fallthru
      _
    // Predicated region
    $region10: #{feed_forward.3} parent=1 // pred_check
      _
    $region11: #{feed_forward.3} parent=1 // pred_check_branch
      %14 = sbr.rel (0) target = $region13
    $region12: #{feed_forward.3} parent=1 // pred_region
      _
    $region13: #{feed_forward.3} parent=1 // pred_fallthru
      _
    %p16 = scmp.eq.s32.totalorder 0, 0
    // Predicated region
    $region14: #{feed_forward.3} parent=1 // pred_check
      %p17 = pneg %p16
    $region15: #{feed_forward.3} parent=1 // pred_check_branch
      %19 = sbr.rel (%p17) target = $region17
    $region16: #{feed_forward.3} parent=1 // pred_region
      %vm20 = vcmask 261120
      %21 = vst.msk [vmem:[#allocation2] sm:$0xff] %vm20, 0.0
      %22 = vst.msk [vmem:[#allocation2 + $0x8] sm:$0xff] %vm20, 0.0
    $region17: #{feed_forward.3} parent=1 // pred_fallthru
      _
    %v23 = vld [vmem:[#allocation2] sm:$0xff]
    %v24 = vld [vmem:[#allocation2 + $0x8] sm:$0xff]
    %v25 = vld [vmem:[%s0] sm:$0xf]
    %v26 = vld [vmem:[%s0 + $0x4] sm:$0xf]
    %v27 = vld [vmem:[%s1] sm:$0xf]
    %v28 = vld [vmem:[%s1 + $0x4] sm:$0xf]
    %v29 = vld [vmem:[%s1 + $0x8] sm:$0xf]
    %v30 = vld [vmem:[%s1 + $0xc] sm:$0xf]
    %v31 = vld [vmem:[%s1 + $0x10] sm:$0xf]
    %v32 = vld [vmem:[%s1 + $0x14] sm:$0xf]
    %v33 = vld [vmem:[%s1 + $0x18] sm:$0xf]
    %v34 = vld [vmem:[%s1 + $0x1c] sm:$0xf]
    %v35 = vld [vmem:[%s1 + $0x20] sm:$0xf]
    %v36 = vld [vmem:[%s1 + $0x24] sm:$0xf]
    %v37 = vld [vmem:[%s1 + $0x28] sm:$0xf]
    %v38 = vld [vmem:[%s1 + $0x2c] sm:$0xf]
    %v39 = vld [vmem:[%s1 + $0x30] sm:$0xf]
    %v40 = vld [vmem:[%s1 + $0x34] sm:$0xf]
    %v41 = vld [vmem:[%s1 + $0x38] sm:$0xf]
    %v42 = vld [vmem:[%s1 + $0x3c] sm:$0xf]
    %v45 = vunpack.c.l.b16 %v25
    %v46 = vunpack.c.l.b16 %v26
    %v47 = vpack.c.b16 %v46, %v45
    %v65 = vunpack.c.l.b16 %v27
    %v66 = vunpack.c.l.b16 %v28
    %v67 = vunpack.c.l.b16 %v29
    %v68 = vunpack.c.l.b16 %v30
    %v69 = vunpack.c.l.b16 %v31
    %v70 = vunpack.c.l.b16 %v32
    %v71 = vunpack.c.l.b16 %v33
    %v72 = vunpack.c.l.b16 %v34
    %v73 = vunpack.c.l.b16 %v35
    %v74 = vunpack.c.l.b16 %v36
    %v75 = vunpack.c.l.b16 %v37
    %v76 = vunpack.c.l.b16 %v38
    %v77 = vunpack.c.l.b16 %v39
    %v78 = vunpack.c.l.b16 %v40
    %v79 = vunpack.c.l.b16 %v41
    %v80 = vunpack.c.l.b16 %v42
    %v81 = vpack.c.b16 %v66, %v65
    %v82 = vpack.c.b16 %v68, %v67
    %v83 = vpack.c.b16 %v70, %v69
    %v84 = vpack.c.b16 %v72, %v71
    %v85 = vpack.c.b16 %v74, %v73
    %v86 = vpack.c.b16 %v76, %v75
    %v87 = vpack.c.b16 %v78, %v77
    %v88 = vpack.c.b16 %v80, %v79
    %97 = vmatprep.subr.bf16.mxu0 0
    %98 = vmatpush1.bf16.msra.mxu0 %v81
    %99 = vmatprep.subr.bf16.mxu0 0
    %100 = vmatpush1.bf16.msra.mxu0 %v82
    %101 = vmatprep.subr.bf16.mxu0 0
    %102 = vmatpush1.bf16.msra.mxu0 %v83
    %103 = vmatprep.subr.bf16.mxu0 0
    %104 = vmatpush1.bf16.msra.mxu0 %v84
    %105 = vmatprep.subr.bf16.mxu0 0
    %106 = vmatpush1.bf16.msra.mxu0 %v85
    %107 = vmatprep.subr.bf16.mxu0 0
    %108 = vmatpush1.bf16.msra.mxu0 %v86
    %109 = vmatprep.subr.bf16.mxu0 0
    %110 = vmatpush1.bf16.msra.mxu0 %v87
    %111 = vmatprep.subr.bf16.mxu0 0
    %112 = vmatpush1.bf16.msra.mxu0 %v88
    %113 = vmatprep.subr.bf16.mxu0 0
    %114 = vmatpush1.bf16.msra.mxu0 0
    %115 = vmatprep.subr.bf16.mxu0 0
    %116 = vmatpush1.bf16.msra.mxu0 0
    %117 = vmatprep.subr.bf16.mxu0 0
    %118 = vmatpush1.bf16.msra.mxu0 0
    %119 = vmatprep.subr.bf16.mxu0 0
    %120 = vmatpush1.bf16.msra.mxu0 0
    %121 = vmatprep.subr.bf16.mxu0 0
    %122 = vmatpush1.bf16.msra.mxu0 0
    %123 = vmatprep.subr.bf16.mxu0 0
    %124 = vmatpush1.bf16.msra.mxu0 0
    %125 = vmatprep.subr.bf16.mxu0 0
    %126 = vmatpush1.bf16.msra.mxu0 0
    %127 = vmatprep.subr.bf16.mxu0 0
    %128 = vmatpush1.bf16.msra.mxu0 0
    %129 = vmatprep.mubr.bf16.mxu0 0
    %130 = vmatmul.mubr.bf16.gmra.mrb[0].mxu0 %v47
    %v131 = vpop.f32.mrb[0].mxu0
    %v132 = vadd.f32 0.0, %v131
    %v133 = vpop.f32.mrb[0].mxu0
    %v134 = vpop.f32.mrb[0].mxu0
    %v135 = vadd.f32 0.0, %v134
    %v136 = vpop.f32.mrb[0].mxu0
    %137 = vdwg.mxu0
    %v138 = vadd.f32 %v23, %v132
    %v139 = vadd.f32 %v24, %v135
    %vm140 = vcmask 261120
    %141 = vst.msk [vmem:[#allocation2] sm:$0xff] %vm140, %v138
    %142 = vst.msk [vmem:[#allocation2 + $0x8] sm:$0xff] %vm140, %v139
    // Predicated region
    $region18: #{feed_forward.3} parent=1 // pred_check
      %p143 = pneg %p16
    $region19: #{feed_forward.3} parent=1 // pred_check_branch
      %145 = sbr.rel (%p143) target = $region21
    $region20: #{feed_forward.3} parent=1 // pred_region
      %v146 = vld [vmem:[#allocation2] sm:$0xff]
      %v147 = vld [vmem:[#allocation2 + $0x8] sm:$0xff]
      %v148 = vld [vmem:[%s2] sm:$0x1]
      %v150 = vlaneseq
      %v151 = vshrl.u32 %v150, 7
      %v152 = vsub.s32 0, %v151
      %v153 = vrot.slane %v148, %v152
      %v155 = vadd.f32 %v146, %v153
      %v156 = vadd.f32 %v147, %v153
      %157 = vst.msk [vmem:[#allocation3] sm:$0xff] %vm140, %v155
      %158 = vst.msk [vmem:[#allocation3 + $0x8] sm:$0xff] %vm140, %v156
    $region21: #{feed_forward.3} parent=1 // pred_fallthru
      _
    // Predicated region
    $region22: #{feed_forward.3} parent=1 // pred_check
      _
    $region23: #{feed_forward.3} parent=1 // pred_check_branch
      %160 = sbr.rel (0) target = $region25
    $region24: #{feed_forward.3} parent=1 // pred_region
      %s162 = ssub.s32 256, 256
      %163 = vsyncadd [#allocation4], %s162
      %s164 = sshll.u32 [#allocation3], 4
      %s165 = int_to_ptr.vmem [resolvable:$true] %s164
      %170 = dma.vmem_to_hbm [thread:$0]  %s165, 256, %s3, [#allocation4], 128, 128, 8
    $region25: #{feed_forward.3} parent=1 // pred_fallthru
      _
    // Predicated region
    $region26: #{feed_forward.3} parent=1 // pred_check
      _
    $region27: #{feed_forward.3} parent=1 // pred_check_branch
      %172 = sbr.rel (0) target = $region29
    $region28: #{feed_forward.3} parent=1 // pred_region
      %173 = dma.done [#allocation4], 256
    $region29: #{feed_forward.3} parent=1 // pred_fallthru
      _
    %174 = vsyncpa [#allocation4], 1

// kernel: feed_forward.2
$region0: #{feed_forward.2}
  #allocation0 [shape = 'u32[]', space=smem, size = 0x4, offset = 0x4, fixed_abs, tag = 'smem constant byte address 0x4 - core index']
  #allocation1 [shape = 'u32[144,128]{1,0:T(1,128)}', space=vmem, size = 0x12000, scoped, tag = 'internal scratch']
  #allocation2 [shape = 'f32[16,128]{1,0:T(8,128)}', space=vmem, size = 0x2000, scoped, tag = 'scratch operand']
  %s0 = inlined_call_operand.vmem [shape: bf16[16,32], index: 0, kind: input, shape index: {}]
  %s1 = inlined_call_operand.vmem [shape: bf16[32,128], index: 1, kind: input, shape index: {}]
  %s2 = inlined_call_operand.vmem [shape: f32[1,128], index: 2, kind: input, shape index: {}]
  %s3 = inlined_call_operand.vmem [shape: bf16[16,128], index: 3, kind: output, shape index: {}]
  %s4 = sld [smem:[#allocation0]]
  $region30: #{feed_forward.2} parent=0
    _
  %s6 = ssub.s32 1, %s4
  %s7 = scalar_select 0, %s6, %s4
  // Predicated region
  $region2: #{feed_forward.2} parent=0 // pred_check
    _
  $region3: #{feed_forward.2} parent=0 // pred_check_branch
    %9 = sbr.rel (0) target = $region5
  $region4: #{feed_forward.2} parent=0 // pred_region
    _
  $region5: #{feed_forward.2} parent=0 // pred_fallthru
    _
  // Predicated region
  $region6: #{feed_forward.2} parent=0 // pred_check
    _
  $region7: #{feed_forward.2} parent=0 // pred_check_branch
    %11 = sbr.rel (0) target = $region9
  $region8: #{feed_forward.2} parent=0 // pred_region
    _
  $region9: #{feed_forward.2} parent=0 // pred_fallthru
    _
  // Predicated region
  $region10: #{feed_forward.2} parent=0 // pred_check
    _
  $region11: #{feed_forward.2} parent=0 // pred_check_branch
    %13 = sbr.rel (0) target = $region13
  $region12: #{feed_forward.2} parent=0 // pred_region
    _
  $region13: #{feed_forward.2} parent=0 // pred_fallthru
    _
  %p15 = scmp.eq.s32.totalorder 0, 0
  // Predicated region
  $region14: #{feed_forward.2} parent=0 // pred_check
    %p16 = pneg %p15
  $region15: #{feed_forward.2} parent=0 // pred_check_branch
    %18 = sbr.rel (%p16) target = $region17
  $region16: #{feed_forward.2} parent=0 // pred_region
    %19 = vst [vmem:[#allocation2] sm:$0xff] 0.0
    %20 = vst [vmem:[#allocation2 + $0x8] sm:$0xff] 0.0
  $region17: #{feed_forward.2} parent=0 // pred_fallthru
    _
  %v21 = vld [vmem:[#allocation2] sm:$0xff]
  %v22 = vld [vmem:[#allocation2 + $0x8] sm:$0xff]
  %v23 = vld [vmem:[%s0] sm:$0xf]
  %v24 = vld [vmem:[%s0 + $0x4] sm:$0xf]
  %v25 = vld [vmem:[%s1] sm:$0xf]
  %v26 = vld [vmem:[%s1 + $0x4] sm:$0xf]
  %v27 = vld [vmem:[%s1 + $0x8] sm:$0xf]
  %v28 = vld [vmem:[%s1 + $0xc] sm:$0xf]
  %v31 = vunpack.c.l.b16 %v23
  %v32 = vunpack.c.l.b16 %v24
  %v33 = vpack.c.b16 %v32, %v31
  %v38 = vunpack.c.l.b16 %v25
  %v39 = vunpack.c.l.b16 %v26
  %v40 = vunpack.c.l.b16 %v27
  %v41 = vunpack.c.l.b16 %v28
  %v42 = vpack.c.b16 %v39, %v38
  %v43 = vpack.c.b16 %v41, %v40
  %vm46 = vcmask 261120
  %v48 = vsel %vm46, %v33, 0
  %50 = vmatprep.subr.bf16.mxu0 0
  %51 = vmatpush1.bf16.msra.mxu0 %v42
  %52 = vmatprep.subr.bf16.mxu0 0
  %53 = vmatpush1.bf16.msra.mxu0 %v43
  %54 = vmatprep.subr.bf16.mxu0 0
  %55 = vmatpush1.bf16.msra.mxu0 0
  %56 = vmatprep.subr.bf16.mxu0 0
  %57 = vmatpush1.bf16.msra.mxu0 0
  %58 = vmatprep.subr.bf16.mxu0 0
  %59 = vmatpush1.bf16.msra.mxu0 0
  %60 = vmatprep.subr.bf16.mxu0 0
  %61 = vmatpush1.bf16.msra.mxu0 0
  %62 = vmatprep.subr.bf16.mxu0 0
  %63 = vmatpush1.bf16.msra.mxu0 0
  %64 = vmatprep.subr.bf16.mxu0 0
  %65 = vmatpush1.bf16.msra.mxu0 0
  %66 = vmatprep.subr.bf16.mxu0 0
  %67 = vmatpush1.bf16.msra.mxu0 0
  %68 = vmatprep.subr.bf16.mxu0 0
  %69 = vmatpush1.bf16.msra.mxu0 0
  %70 = vmatprep.subr.bf16.mxu0 0
  %71 = vmatpush1.bf16.msra.mxu0 0
  %72 = vmatprep.subr.bf16.mxu0 0
  %73 = vmatpush1.bf16.msra.mxu0 0
  %74 = vmatprep.subr.bf16.mxu0 0
  %75 = vmatpush1.bf16.msra.mxu0 0
  %76 = vmatprep.subr.bf16.mxu0 0
  %77 = vmatpush1.bf16.msra.mxu0 0
  %78 = vmatprep.subr.bf16.mxu0 0
  %79 = vmatpush1.bf16.msra.mxu0 0
  %80 = vmatprep.subr.bf16.mxu0 0
  %81 = vmatpush1.bf16.msra.mxu0 0
  %82 = vmatprep.mubr.bf16.mxu0 0
  %83 = vmatmul.mubr.bf16.gmra.mrb[0].mxu0 %v48
  %v84 = vpop.f32.mrb[0].mxu0
  %v85 = vadd.f32 0.0, %v84
  %v86 = vpop.f32.mrb[0].mxu0
  %v87 = vpop.f32.mrb[0].mxu0
  %v88 = vadd.f32 0.0, %v87
  %v89 = vpop.f32.mrb[0].mxu0
  %90 = vdwg.mxu0
  %v91 = vadd.f32 %v21, %v85
  %v92 = vadd.f32 %v22, %v88
  %93 = vst [vmem:[#allocation2] sm:$0xff] %v91
  %94 = vst [vmem:[#allocation2 + $0x8] sm:$0xff] %v92
  // Predicated region
  $region18: #{feed_forward.2} parent=0 // pred_check
    %p95 = pneg %p15
  $region19: #{feed_forward.2} parent=0 // pred_check_branch
    %97 = sbr.rel (%p95) target = $region21
  $region20: #{feed_forward.2} parent=0 // pred_region
    %v98 = vld [vmem:[#allocation2] sm:$0xff]
    %v99 = vld [vmem:[#allocation2 + $0x8] sm:$0xff]
    %v100 = vld [vmem:[%s2] sm:$0x1]
    %v102 = vlaneseq
    %v103 = vshrl.u32 %v102, 7
    %v104 = vsub.s32 0, %v103
    %v105 = vrot.slane %v100, %v104
    %v107 = vadd.f32 %v98, %v105
    %v108 = vadd.f32 %v99, %v105
    %v109 = vmul.f32 %v107, 0.5
    %v110 = vmul.f32 %v108, 0.5
    %v111 = vmul.f32 %v107, 0.70710677
    %v112 = vmul.f32 %v108, 0.70710677
    %v113 = verf.f32.pop %v111
    %v114 = verf.f32.pop %v112
    %v115 = vadd.f32 %v113, 1.0
    %v116 = vadd.f32 %v114, 1.0
    %v117 = vmul.f32 %v109, %v115
    %v118 = vmul.f32 %v110, %v116
    %v119 = vpack.c.bf16 %v118, %v117
    %v121 = vunpack.c.l.b16 %v119
    %v122 = vunpack.c.h.b16 %v119
    %v123 = vpack.c.b16 %v121, %v121
    %v124 = vpack.c.b16 %v122, %v122
    %127 = vst [vmem:[%s3] sm:$0xf] %v123
    %128 = vst [vmem:[%s3 + $0x4] sm:$0xf] %v124
  $region21: #{feed_forward.2} parent=0 // pred_fallthru
    _
  // Predicated region
  $region22: #{feed_forward.2} parent=0 // pred_check
    _
  $region23: #{feed_forward.2} parent=0 // pred_check_branch
    %130 = sbr.rel (0) target = $region25
  $region24: #{feed_forward.2} parent=0 // pred_region
    _
  $region25: #{feed_forward.2} parent=0 // pred_fallthru
    _
  // Predicated region
  $region26: #{feed_forward.2} parent=0 // pred_check
    _
  $region27: #{feed_forward.2} parent=0 // pred_check_branch
    %132 = sbr.rel (0) target = $region29
  $region28: #{feed_forward.2} parent=0 // pred_region
    _
  $region29: #{feed_forward.2} parent=0 // pred_fallthru
    _

</llo_original>
